<compile_context>
chip_gen: v7x
topology: tpu7x:2x2x1
jax: 0.10.0
libtpu: 0.0.40
codegen_flags: <defaults>
</compile_context>

<pallas_src>
import functools

import jax
import jax.numpy as jnp
from jax.experimental import pallas as pl
from jax.experimental.pallas import tpu as pltpu


# ---------------------------------------------------------------------------
# Helpers
# ---------------------------------------------------------------------------
def _largest_divisor(n, cap):
    d = max(1, min(n, cap))
    while n % d:
        d -= 1
    return d


# ---------------------------------------------------------------------------
# Path A kernel: broadcast a (tp, d_model) slab of W_pos over bt batch rows.
# Copies in rc-row chunks so live vreg footprint stays small for large tiles.
# ---------------------------------------------------------------------------
def _bcast_kernel(w_ref, o_ref, *, bt, rc):
    n_chunks = w_ref.shape[0] // rc
    for i in range(bt):                       # static unroll over batch rows
        for c in range(n_chunks):             # static unroll over row chunks
            sl = pl.ds(c * rc, rc)
            o_ref[i, sl] = w_ref[sl]


# ---------------------------------------------------------------------------
# Path B kernel: one contiguous-run gather per (batch, pos-tile) step.
# start_ref[b] points into W_ext (zero prefix handles left padding), so the
# DMA lands the correct rows — padded positions fetch exact zeros.
# ---------------------------------------------------------------------------
def _gather_kernel(start_ref, w_ext_hbm, o_ref, sem, *, tp):
    b = pl.program_id(0)
    t = pl.program_id(1)
    start = start_ref[b] + t * tp
    cp = pltpu.make_async_copy(w_ext_hbm.at[pl.ds(start, tp)], o_ref.at[0], sem)
    cp.start()
    cp.wait()


# ---------------------------------------------------------------------------
# Wrapper
# ---------------------------------------------------------------------------
def pos_embed_forward(W_pos, tokens, past_kv_pos_offset=0,
                      left_attention_mask=None, *, tile_bytes=2 << 20):
    batch, pos = tokens.shape
    n_ctx, d_model = W_pos.shape
    offset = int(past_kv_pos_offset)
    dtype = W_pos.dtype
    row_bytes = d_model * jnp.dtype(dtype).itemsize

    # Positions per grid step: as many rows as fit the byte budget, dividing pos.
    tp = _largest_divisor(pos, max(1, tile_bytes // row_bytes))
    n_pt = pos // tp

    cparams = pltpu.CompilerParams(
        dimension_semantics=("parallel", "parallel"),
        vmem_limit_bytes=32 * 1024 * 1024)

    if left_attention_mask is None:
        # ---- Path A: out[b, q, :] = W_pos[offset + q, :], broadcast over batch.
        w_slice = W_pos[offset:offset + pos]          # static slice (offset is a Python int)
        bt = _largest_divisor(batch, max(1, (2 * tile_bytes) // (tp * row_bytes)))
        n_bt = batch // bt
        rc = _largest_divisor(tp, 128)                # vreg-friendly copy chunk (rows)
        return pl.pallas_call(
            functools.partial(_bcast_kernel, bt=bt, rc=rc),
            out_shape=jax.ShapeDtypeStruct((batch, pos, d_model), dtype),
            grid=(n_pt, n_bt),                        # batch innermost: W block reused
            in_specs=[pl.BlockSpec((tp, d_model), lambda t, b: (t, 0))],
            out_specs=pl.BlockSpec((bt, tp, d_model), lambda t, b: (b, t, 0)),
            compiler_params=cparams,
        )(w_slice)

    # ---- Path B: left-padding mask → contiguous ramp of position ids per row.
    total_pos = left_attention_mask.shape[1]
    mask_i32 = left_attention_mask.astype(jnp.int32)
    pad = total_pos - jnp.sum(mask_i32, axis=1)       # (batch,) left-pad counts

    # W_ext = [zeros(prepad); W_pos; zeros(guard)] so that padded positions map
    # onto exact-zero rows and no in-kernel masking is needed.
    prepad = pos
    guard = max(0, offset + pos - n_ctx)
    pieces = [jnp.zeros((prepad, d_model), dtype), W_pos]
    if guard:
        pieces.append(jnp.zeros((guard, d_model), dtype))
    w_ext = jnp.concatenate(pieces, axis=0)           # stays in HBM (pl.ANY)

    n_rows_ext = prepad + n_ctx + guard
    start_base = jnp.clip(prepad + offset - pad, 0, n_rows_ext - pos)
    start_base = start_base.astype(jnp.int32)         # (batch,) → SMEM via prefetch

    grid_spec = pltpu.PrefetchScalarGridSpec(
        num_scalar_prefetch=1,
        grid=(batch, n_pt),
        in_specs=[pl.BlockSpec(memory_space=pl.ANY)],
        out_specs=pl.BlockSpec((1, tp, d_model),
                               lambda b, t, start_ref: (b, t, 0)),
        scratch_shapes=[pltpu.SemaphoreType.DMA],
    )
    return pl.pallas_call(
        functools.partial(_gather_kernel, tp=tp),
        out_shape=jax.ShapeDtypeStruct((batch, pos, d_model), dtype),
        grid_spec=grid_spec,
        compiler_params=cparams,
    )(start_base, w_ext)


# ---------------------------------------------------------------------------
# Pure-JAX reference (mirrors the PyTorch forward exactly)
# ---------------------------------------------------------------------------
def pos_embed_ref(W_pos, tokens, past_kv_pos_offset=0, left_attention_mask=None):
    batch, pos = tokens.shape
    d_model = W_pos.shape[1]
    off = int(past_kv_pos_offset)
    if left_attention_mask is None:
        pe = W_pos[off:off + pos, :]
        return jnp.broadcast_to(pe[None], (batch, pos, d_model))
    mask_t = left_attention_mask.T                               # (total_pos, batch)
    shifted = jnp.cumsum(mask_t, axis=0) - 1
    position_ids = jnp.where(shifted < 0, 0, shifted)
    off_ids = position_ids[off:off + pos]                        # (pos, batch)
    pe = W_pos[off_ids]                                          # (pos, batch, d_model)
    padding = ~(mask_t.astype(bool))
    off_pad = padding[off:off + pos][..., None]
    return jnp.where(off_pad, 0.0, pe).transpose(1, 0, 2)


# ---------------------------------------------------------------------------
if __name__ == "__main__":
    key = jax.random.PRNGKey(0)
    k_w, k_tok = jax.random.split(key)

    # Small config; d_model=128 keeps the output lane-dense (multiple of 128).
    n_ctx, d_model = 16, 128
    batch, pos = 2, 8

    W_pos = jax.random.normal(k_w, (n_ctx, d_model), dtype=jnp.float32) * 0.02
    tokens = jax.random.randint(k_tok, (batch, pos), 0, 100, dtype=jnp.int32)

    # left-padded attention mask: row 0 has 2 pad tokens, row 1 none
    left_mask = jnp.array(
        [[0, 0, 1, 1, 1, 1, 1, 1],
         [1, 1, 1, 1, 1, 1, 1, 1]], dtype=jnp.int32)

    # Path A: no mask (right padding)
    out_a = pos_embed_forward(W_pos, tokens, past_kv_pos_offset=0)
    jax.block_until_ready(out_a)
    ref_a = pos_embed_ref(W_pos, tokens, past_kv_pos_offset=0)
    assert out_a.shape == (batch, pos, d_model)
    assert jnp.allclose(out_a, ref_a, atol=1e-6)

    # Path A with a past-kv offset
    out_a2 = pos_embed_forward(W_pos, tokens, past_kv_pos_offset=4)
    jax.block_until_ready(out_a2)
    ref_a2 = pos_embed_ref(W_pos, tokens, past_kv_pos_offset=4)
    assert jnp.allclose(out_a2, ref_a2, atol=1e-6)

    # Path B: left-padding mask
    out_b = pos_embed_forward(W_pos, tokens, past_kv_pos_offset=0,
                              left_attention_mask=left_mask)
    jax.block_until_ready(out_b)
    ref_b = pos_embed_ref(W_pos, tokens, past_kv_pos_offset=0,
                          left_attention_mask=left_mask)
    assert out_b.shape == (batch, pos, d_model)
    assert jnp.allclose(out_b, ref_b, atol=1e-6)

    # Path B with a past-kv offset (mask covers offset + pos positions)
    left_mask_kv = jnp.concatenate(
        [jnp.array([[0, 0, 1, 1], [1, 1, 1, 1]], dtype=jnp.int32),
         jnp.ones((batch, pos), dtype=jnp.int32)], axis=1)        # (2, 12)
    out_b2 = pos_embed_forward(W_pos, tokens, past_kv_pos_offset=4,
                               left_attention_mask=left_mask_kv)
    jax.block_until_ready(out_b2)
    ref_b2 = pos_embed_ref(W_pos, tokens, past_kv_pos_offset=4,
                           left_attention_mask=left_mask_kv)
    assert jnp.allclose(out_b2, ref_b2, atol=1e-6)

    print("KERNEL_OK")
</pallas_src>

<mosaic_0001>
module attributes {stable_mosaic.version = 11 : i64} {
  func.func @_bcast_kernel(%arg0: i32, %arg1: i32, %arg2: memref<8x128xf32, #tpu.memory_space<vmem>>, %arg3: memref<2x8x128xf32, #tpu.memory_space<vmem>>) attributes {dimension_semantics = [#tpu.dimension_semantics<parallel>, #tpu.dimension_semantics<parallel>], iteration_bounds = array<i64: 1, 1>, scalar_prefetch = 0 : i64, scratch_operands = 0 : i64, tpu.core_type = #tpu.core_type<tc>, window_params = [{transform_indices = @transform_0, window_bounds = array<i64: 8, 128>}, {transform_indices = @transform_1, window_bounds = array<i64: 2, 8, 128>}]} {
    %c0 = arith.constant 0 : index
    %c0_0 = arith.constant 0 : index
    %0 = vector.load %arg2[%c0, %c0_0] : memref<8x128xf32, #tpu.memory_space<vmem>>, vector<8x128xf32>
    %c0_1 = arith.constant 0 : index
    %c0_2 = arith.constant 0 : index
    %c0_3 = arith.constant 0 : index
    %1 = vector.load %arg3[%c0_1, %c0_2, %c0_3] : memref<2x8x128xf32, #tpu.memory_space<vmem>>, vector<1x8x128xf32>
    %2 = vector.shape_cast %1 : vector<1x8x128xf32> to vector<8x128xf32>
    %3 = vector.shape_cast %0 : vector<8x128xf32> to vector<1x8x128xf32>
    tpu.vector_store %arg3[%c0_1, %c0_2, %c0_3], %3 {strides = array<i32>} : memref<2x8x128xf32, #tpu.memory_space<vmem>>, vector<1x8x128xf32>,
    %c0_4 = arith.constant 0 : index
    %c0_5 = arith.constant 0 : index
    %4 = vector.load %arg2[%c0_4, %c0_5] : memref<8x128xf32, #tpu.memory_space<vmem>>, vector<8x128xf32>
    %c1 = arith.constant 1 : index
    %c0_6 = arith.constant 0 : index
    %c0_7 = arith.constant 0 : index
    %5 = vector.load %arg3[%c1, %c0_6, %c0_7] : memref<2x8x128xf32, #tpu.memory_space<vmem>>, vector<1x8x128xf32>
    %6 = vector.shape_cast %5 : vector<1x8x128xf32> to vector<8x128xf32>
    %7 = vector.shape_cast %4 : vector<8x128xf32> to vector<1x8x128xf32>
    tpu.vector_store %arg3[%c1, %c0_6, %c0_7], %7 {strides = array<i32>} : memref<2x8x128xf32, #tpu.memory_space<vmem>>, vector<1x8x128xf32>,
    return
  }
  func.func @transform_0(%arg0: i32, %arg1: i32) -> (i32, i32) {
    %c0_i32 = arith.constant 0 : i32
    %c0_i32_0 = arith.constant 0 : i32
    return %arg0, %c0_i32 : i32, i32
  }
  func.func @transform_1(%arg0: i32, %arg1: i32) -> (i32, i32, i32) {
    %c0_i32 = arith.constant 0 : i32
    %c0_i32_0 = arith.constant 0 : i32
    return %arg1, %arg0, %c0_i32 : i32, i32, i32
  }
}

</mosaic_0001>

<llo_original>
// kernel: tpu_custom_call.1
$region0: #{tpu_custom_call.1}
  #allocation0 [shape = 'u32[]', space=smem, size = 0x4, offset = 0x4, fixed_abs, tag = 'smem constant byte address 0x4 - core index']
  #allocation1 [shape = 'u32[144,128]{1,0:T(1,128)}', space=vmem, size = 0x12000, scoped, tag = 'internal scratch']
  %s0 = inlined_call_operand.hbm [shape: f32[8,128], index: 0, kind: input, shape index: {}]
  %s1 = inlined_call_operand.hbm [shape: f32[2,8,128], index: 1, kind: output, shape index: {}]
  %s2 = sld [smem:[#allocation0]]
  $region18: #{tpu_custom_call.1} parent=0
    _
  %s4 = ssub.s32 1, %s2
  %s5 = scalar_select 0, %s4, %s2
  $region1: #{tpu_custom_call.1} parent=0
    #allocation2 [shape = 'u8[4096]{0}', space=vmem, size = 0x1000, scoped, tag = 'input window, operand 0, single buffered']
    #allocation3 [shape = 's32[1]{0}', space=sflag, size = 0x4, scoped, tag = 'scoped memory for tpu_custom_call.1']
    #allocation4 [shape = 's32[1]{0}', space=sflag, size = 0x4, scoped, tag = 'scoped memory for tpu_custom_call.1']
    #allocation5 [shape = 'u8[8192]{0}', space=vmem, size = 0x2000, scoped, tag = 'output window, operand 0, single buffered']
    %6 = vsyncpa [#allocation3], 0
    %7 = vsyncpa [#allocation4], 0
    // Predicated region
    $region2: #{tpu_custom_call.1} parent=1 // pred_check
      _
    $region3: #{tpu_custom_call.1} parent=1 // pred_check_branch
      %9 = sbr.rel (0) target = $region5
    $region4: #{tpu_custom_call.1} parent=1 // pred_region
      %s11 = ssub.s32 128, 128
      %12 = vsyncadd [#allocation3], %s11
      %s14 = sshll.u32 [#allocation2], 4
      %s15 = int_to_ptr.vmem [resolvable:$true] %s14
      %17 = dma.hbm_to_vmem [thread:$0]  %s0, 128, %s15, [#allocation3]
    $region5: #{tpu_custom_call.1} parent=1 // pred_fallthru
      _
    // Predicated region
    $region6: #{tpu_custom_call.1} parent=1 // pred_check
      _
    $region7: #{tpu_custom_call.1} parent=1 // pred_check_branch
      %19 = sbr.rel (0) target = $region9
    $region8: #{tpu_custom_call.1} parent=1 // pred_region
      %20 = dma.done [#allocation3], 128
    $region9: #{tpu_custom_call.1} parent=1 // pred_fallthru
      _
    %v21 = vld [vmem:[#allocation2] sm:$0xff]
    %22 = vst [vmem:[#allocation5] sm:$0xff] %v21
    %v23 = vld [vmem:[#allocation2] sm:$0xff]
    %s24 = scalar_lea.vmem [#allocation5], 8
    %25 = vst [vmem:[%s24] sm:$0xff] %v23
    // Predicated region
    $region10: #{tpu_custom_call.1} parent=1 // pred_check
      _
    $region11: #{tpu_custom_call.1} parent=1 // pred_check_branch
      %27 = sbr.rel (0) target = $region13
    $region12: #{tpu_custom_call.1} parent=1 // pred_region
      %s29 = ssub.s32 256, 256
      %30 = vsyncadd [#allocation4], %s29
      %s31 = sshll.u32 [#allocation5], 4
      %s32 = int_to_ptr.vmem [resolvable:$true] %s31
      %37 = dma.vmem_to_hbm [thread:$0]  %s32, 256, %s1, [#allocation4], 128, 128, 8
    $region13: #{tpu_custom_call.1} parent=1 // pred_fallthru
      _
    // Predicated region
    $region14: #{tpu_custom_call.1} parent=1 // pred_check
      _
    $region15: #{tpu_custom_call.1} parent=1 // pred_check_branch
      %39 = sbr.rel (0) target = $region17
    $region16: #{tpu_custom_call.1} parent=1 // pred_region
      %40 = dma.done [#allocation4], 256
    $region17: #{tpu_custom_call.1} parent=1 // pred_fallthru
      _
    %41 = vsyncpa [#allocation3], 1
    %42 = vsyncpa [#allocation4], 1

</llo_original>
